<compile_context>
chip_gen: v7x
topology: tpu7x:2x2x1
jax: 0.10.0
libtpu: 0.0.40
codegen_flags: <defaults>
</compile_context>

<pallas_src>
import jax
import jax.numpy as jnp
from jax.experimental import pallas as pl
from jax.experimental.pallas import tpu as pltpu


def _round_up(n, m):
    return ((n + m - 1) // m) * m


def _sublane_multiple(dtype):
    itemsize = jnp.dtype(dtype).itemsize
    if itemsize >= 4:
        return 8
    if itemsize == 2:
        return 16
    return 32


def _proto_head_kernel(x_ref, w_ref, b_ref, o_ref):
    # x_ref: (tb, D)    activation tile (streams over the batch grid axis)
    # w_ref: (D, Pb)    pre-transposed weight tile (prototype axis on lanes)
    # b_ref: (1, Pb)    f32 bias tile
    # o_ref: (tb, Pb)   logits tile
    x_val = x_ref[...]
    w_val = w_ref[...]
    if x_val.dtype != w_val.dtype:
        # Cast the activation tile to the param dtype in-kernel (no separate
        # XLA cast pass in the wrapper); MXU runs in the packed dtype with
        # f32 accumulation below.
        x_val = x_val.astype(w_val.dtype)
    acc = jnp.dot(x_val, w_val, preferred_element_type=jnp.float32)
    o_ref[...] = (acc + b_ref[...]).astype(o_ref.dtype)


def swav_prototype_forward(x, weight_t, bias_row, *, tb_max=1024, tp=512,
                           out_dtype=None, vmem_limit_bytes=48 * 1024 * 1024):
    """logits = x @ weight_t + bias_row.

    weight_t: (D, P_pad) pre-transposed fused weight, P_pad multiple of 128
              (padding columns are zero).
    bias_row: (1, P_pad) float32.
    Returns (B, P_pad) logits in `out_dtype` (default: x.dtype).
    """
    B, D = x.shape
    D_w, P_pad = weight_t.shape
    assert D == D_w
    assert P_pad % 128 == 0
    if out_dtype is None:
        out_dtype = x.dtype
    out_dtype = jnp.dtype(out_dtype)

    x_item = jnp.dtype(x.dtype).itemsize
    w_item = jnp.dtype(weight_t.dtype).itemsize
    o_item = out_dtype.itemsize

    sub = max(_sublane_multiple(x.dtype), _sublane_multiple(out_dtype))
    budget = int(0.8 * vmem_limit_bytes)

    def resident_footprint(tb):
        # Conservative: count two buffers for every operand (the constant-index
        # weight/bias are DMA'd only once but may still be double-buffered).
        return 2 * (D * P_pad * w_item + P_pad * 4
                    + tb * D * x_item + tb * P_pad * o_item)

    # Batch tile: as large as the VMEM budget allows (big lane-dense output
    # bursts, few grid steps), multiple of the sublane packing granularity.
    tb = min(tb_max, _round_up(B, sub))
    tb = max(sub, _round_up(tb, sub))
    while tb > sub and resident_footprint(tb) > budget:
        tb = max(sub, _round_up(tb // 2, sub))

    if resident_footprint(tb) <= budget:
        # ------------- resident-weight path (the common SwAV case) ----------
        B_pad = _round_up(B, tb)
        x_in = jnp.pad(x, ((0, B_pad - B), (0, 0))) if B_pad != B else x
        grid = (B_pad // tb,)

        cost = pl.CostEstimate(
            flops=2 * B_pad * P_pad * D,
            transcendentals=0,
            bytes_accessed=(B_pad * D * x_item          # x read once
                            + D * P_pad * w_item        # W read once (resident)
                            + P_pad * 4                 # bias read once
                            + B_pad * P_pad * o_item),  # logits written once
        )

        out = pl.pallas_call(
            _proto_head_kernel,
            out_shape=jax.ShapeDtypeStruct((B_pad, P_pad), out_dtype),
            grid=grid,
            in_specs=[
                # x streams over the single batch grid axis.
                pl.BlockSpec((tb, D), lambda i: (i, 0)),
                # Weight and bias are fully resident: constant block index ->
                # one HBM read for the whole kernel.
                pl.BlockSpec((D, P_pad), lambda i: (0, 0)),
                pl.BlockSpec((1, P_pad), lambda i: (0, 0)),
            ],
            out_specs=pl.BlockSpec((tb, P_pad), lambda i: (i, 0)),
            compiler_params=pltpu.CompilerParams(
                dimension_semantics=("parallel",),   # shards batch tiles across v7x's 2 TCs
                vmem_limit_bytes=vmem_limit_bytes,
            ),
            cost_estimate=cost,
        )(x_in, weight_t, bias_row)

        return out[:B] if B_pad != B else out

    # ---------------- streaming fallback (fused P too large for VMEM) -------
    # Prototype tiles on the OUTER axis (W tile resident per outer step, read
    # from HBM once) and batch tiles inner, so the smaller tensor (x) streams.
    assert tp % 128 == 0
    P_big = _round_up(P_pad, tp)
    if P_big != P_pad:
        weight_t = jnp.pad(weight_t, ((0, 0), (0, P_big - P_pad)))
        bias_row = jnp.pad(bias_row, ((0, 0), (0, P_big - P_pad)))

    def stream_footprint(tb):
        return 2 * (D * tp * w_item + tp * 4
                    + tb * D * x_item + tb * tp * o_item)

    tb = min(tb_max, _round_up(B, sub))
    tb = max(sub, _round_up(tb, sub))
    while tb > sub and stream_footprint(tb) > budget:
        tb = max(sub, _round_up(tb // 2, sub))

    B_pad = _round_up(B, tb)
    x_in = jnp.pad(x, ((0, B_pad - B), (0, 0))) if B_pad != B else x
    n_p, n_b = P_big // tp, B_pad // tb

    cost = pl.CostEstimate(
        flops=2 * B_pad * P_big * D,
        transcendentals=0,
        bytes_accessed=(n_p * B_pad * D * x_item        # x re-read per prototype tile
                        + D * P_big * w_item            # W read once
                        + P_big * 4
                        + B_pad * P_big * o_item),
    )

    out = pl.pallas_call(
        _proto_head_kernel,
        out_shape=jax.ShapeDtypeStruct((B_pad, P_big), out_dtype),
        grid=(n_p, n_b),
        in_specs=[
            pl.BlockSpec((tb, D), lambda p, i: (i, 0)),   # x streams (inner)
            pl.BlockSpec((D, tp), lambda p, i: (0, p)),   # W tile resident per outer step
            pl.BlockSpec((1, tp), lambda p, i: (0, p)),
        ],
        out_specs=pl.BlockSpec((tb, tp), lambda p, i: (i, p)),
        compiler_params=pltpu.CompilerParams(
            dimension_semantics=("parallel", "parallel"),
            vmem_limit_bytes=vmem_limit_bytes,
        ),
        cost_estimate=cost,
    )(x_in, weight_t, bias_row)

    if B_pad != B or P_big != P_pad:
        out = out[:B, :P_pad]
    return out


class SwaVPrototypes:
    """JAX/Pallas port of lightly's SwaVPrototypes forward pass."""

    def __init__(self, input_dim=128, n_prototypes=3000,
                 n_steps_frozen_prototypes=0, *, key=None,
                 param_dtype=jnp.float32, out_dtype=None,
                 tile_batch_max=1024, vmem_limit_bytes=48 * 1024 * 1024):
        self.n_prototypes = (
            n_prototypes if isinstance(n_prototypes, list) else [n_prototypes]
        )
        self._is_single_prototype = isinstance(n_prototypes, int)
        self.n_steps_frozen_prototypes = n_steps_frozen_prototypes
        self.input_dim = input_dim
        self.param_dtype = jnp.dtype(param_dtype)
        self.out_dtype = None if out_dtype is None else jnp.dtype(out_dtype)
        self.tile_batch_max = tile_batch_max
        self.vmem_limit_bytes = vmem_limit_bytes

        if key is None:
            key = jax.random.PRNGKey(0)

        # Deterministic init matching nn.Linear's default:
        # U(-1/sqrt(fan_in), 1/sqrt(fan_in)).
        bound = 1.0 / (input_dim ** 0.5)
        self.weights = []   # per-head, PyTorch Linear layout (P_h, D)
        self.biases = []    # per-head, (P_h,), kept in f32
        for p in self.n_prototypes:
            key, wk, bk = jax.random.split(key, 3)
            w = jax.random.uniform(wk, (p, input_dim), dtype=jnp.float32,
                                   minval=-bound, maxval=bound)
            b = jax.random.uniform(bk, (p,), dtype=jnp.float32,
                                   minval=-bound, maxval=bound)
            self.weights.append(w.astype(self.param_dtype))
            self.biases.append(b)

        self._build_packed()

    def _build_packed(self):
        # Fuse all heads into one (D, sum P_h) weight, transposed ONCE so the
        # prototype axis lands on lanes; pad to a multiple of 128 (zero columns,
        # sliced away / ignored downstream).
        p_total = sum(self.n_prototypes)
        p_pad = _round_up(p_total, 128)
        w_cat = jnp.concatenate(
            [w.T.astype(self.param_dtype) for w in self.weights], axis=1)
        b_cat = jnp.concatenate([b.astype(jnp.float32) for b in self.biases])
        self.packed_weight_t = jnp.pad(w_cat, ((0, 0), (0, p_pad - p_total)))
        self.packed_bias = jnp.pad(b_cat, (0, p_pad - p_total)).reshape(1, p_pad)

    def __call__(self, x, step=None, *, return_fused=False):
        self._freeze_prototypes_if_required(step)
        out_dtype = self.out_dtype if self.out_dtype is not None else x.dtype

        logits = swav_prototype_forward(
            x, self.packed_weight_t, self.packed_bias,
            tb_max=self.tile_batch_max, out_dtype=out_dtype,
            vmem_limit_bytes=self.vmem_limit_bytes)

        if return_fused:
            # Fused (B, P_pad) logits; slice per-head views inside the
            # consumer's jit to avoid an extra pass over the dominant tensor.
            return logits

        outs = []
        off = 0
        for p in self.n_prototypes:
            if off == 0 and p == logits.shape[1]:
                outs.append(logits)          # exact fit: no slicing copy
            else:
                outs.append(logits[:, off:off + p])
            off += p
        return outs[0] if self._is_single_prototype else outs

    def normalize(self):
        """Normalizes the prototypes so that they are on the unit sphere."""
        new_weights = []
        for w in self.weights:
            w32 = w.astype(jnp.float32)
            n = jnp.linalg.norm(w32, axis=1, keepdims=True)
            w32 = w32 / jnp.maximum(n, 1e-12)   # eps clamp, matches F.normalize
            new_weights.append(w32.astype(self.param_dtype))
        self.weights = new_weights
        self._build_packed()

    def _freeze_prototypes_if_required(self, step=None):
        # TODO(synk): requires_grad_ freezing is an autograd/training concern;
        # it has no forward-pass Pallas equivalent (forward math is unchanged).
        if self.n_steps_frozen_prototypes > 0 and step is None:
            raise ValueError(
                "`n_steps_frozen_prototypes` is greater than 0, please provide "
                "the `step` argument to the `forward()` method."
            )


def _ref_linear(x, w, b):
    return jnp.dot(x, w.T, precision=jax.lax.Precision.HIGHEST) + b


if __name__ == "__main__":
    key = jax.random.PRNGKey(0)
    k_x, k1, k2, k3 = jax.random.split(key, 4)

    batch, input_dim = 8, 32

    # Features (pretend they come from a normalized projection head).
    x = jax.random.normal(k_x, (batch, input_dim), dtype=jnp.float32)
    x = x / jnp.linalg.norm(x, axis=1, keepdims=True)

    # --- single head, prototype count NOT a multiple of 128 ------------------
    single = SwaVPrototypes(input_dim=input_dim, n_prototypes=300, key=k1)
    logits = jax.block_until_ready(single(x))
    assert logits.shape == (batch, 300)
    ref = _ref_linear(x, single.weights[0], single.biases[0])
    assert jnp.allclose(logits, ref, atol=1e-5, rtol=1e-5)

    # --- odd batch (padding path exercised) -----------------------------------
    x_odd = x[:6]
    logits_odd = jax.block_until_ready(single(x_odd))
    assert logits_odd.shape == (6, 300)
    assert jnp.allclose(logits_odd, ref[:6], atol=1e-5, rtol=1e-5)

    # --- multi-head, fused into a single pallas_call -------------------------
    multi = SwaVPrototypes(input_dim=input_dim, n_prototypes=[256, 200], key=k2)
    outs = jax.block_until_ready(multi(x))
    assert isinstance(outs, list) and len(outs) == 2
    for o, w, b, p in zip(outs, multi.weights, multi.biases, multi.n_prototypes):
        assert o.shape == (batch, p)
        assert jnp.allclose(o, _ref_linear(x, w, b), atol=1e-5, rtol=1e-5)
    fused = jax.block_until_ready(multi(x, return_fused=True))
    assert fused.shape[0] == batch and fused.shape[1] % 128 == 0

    # --- bf16-weight path (halves weight reads), f32 accumulate --------------
    bf_head = SwaVPrototypes(input_dim=input_dim, n_prototypes=256, key=k1,
                             param_dtype=jnp.bfloat16)
    logits_bf = jax.block_until_ready(bf_head(x))
    assert logits_bf.dtype == x.dtype and logits_bf.shape == (batch, 256)
    x_bf = x.astype(jnp.bfloat16).astype(jnp.float32)
    w_bf = bf_head.weights[0].astype(jnp.float32)
    ref_bf = _ref_linear(x_bf, w_bf, bf_head.biases[0])
    assert jnp.allclose(logits_bf, ref_bf, atol=1e-2, rtol=1e-2)

    # --- bf16-logits path (halves the dominant output write stream) ----------
    bfo_head = SwaVPrototypes(input_dim=input_dim, n_prototypes=256, key=k3,
                              out_dtype=jnp.bfloat16)
    logits_bfo = jax.block_until_ready(bfo_head(x))
    assert logits_bfo.dtype == jnp.bfloat16 and logits_bfo.shape == (batch, 256)
    ref_bfo = _ref_linear(x, bfo_head.weights[0], bfo_head.biases[0])
    assert jnp.allclose(logits_bfo.astype(jnp.float32), ref_bfo,
                        atol=2e-2, rtol=2e-2)

    # --- normalize(): unit-sphere prototypes, forward still correct ----------
    single.normalize()
    norms = jnp.linalg.norm(single.weights[0], axis=1)
    assert jnp.allclose(norms, 1.0, atol=1e-5)
    logits_n = jax.block_until_ready(single(x))
    ref_n = _ref_linear(x, single.weights[0], single.biases[0])
    assert jnp.allclose(logits_n, ref_n, atol=1e-5, rtol=1e-5)

    print("KERNEL_OK")
</pallas_src>

<mosaic_0001>
module attributes {stable_mosaic.version = 11 : i64} {
  func.func @_proto_head_kernel(%arg0: i32, %arg1: memref<8x32xf32, #tpu.memory_space<vmem>>, %arg2: memref<32x384xf32, #tpu.memory_space<vmem>>, %arg3: memref<1x384xf32, #tpu.memory_space<vmem>>, %arg4: memref<8x384xf32, #tpu.memory_space<vmem>>) attributes {dimension_semantics = [#tpu.dimension_semantics<parallel>], iteration_bounds = array<i64: 1>, scalar_prefetch = 0 : i64, scratch_operands = 0 : i64, tpu.core_type = #tpu.core_type<tc>, window_params = [{transform_indices = @transform_0, window_bounds = array<i64: 8, 32>}, {pipeline_mode = #tpu.pipeline_mode<synchronous>, transform_indices = @transform_1, window_bounds = array<i64: 32, 384>}, {pipeline_mode = #tpu.pipeline_mode<synchronous>, transform_indices = @transform_2, window_bounds = array<i64: 1, 384>}, {transform_indices = @transform_3, window_bounds = array<i64: 8, 384>}]} {
    %c0 = arith.constant 0 : index
    %c0_0 = arith.constant 0 : index
    %0 = vector.load %arg1[%c0, %c0_0] : memref<8x32xf32, #tpu.memory_space<vmem>>, vector<8x32xf32>
    %c0_1 = arith.constant 0 : index
    %c0_2 = arith.constant 0 : index
    %1 = vector.load %arg2[%c0_1, %c0_2] : memref<32x384xf32, #tpu.memory_space<vmem>>, vector<32x384xf32>
    %cst = arith.constant dense<0.000000e+00> : vector<8x384xf32>
    %2 = tpu.matmul %0, %1, %cst {dimension_numbers = #tpu.dot_dimension_numbers<[1], [0], [0], [1], [0, 0, 1, 1], [], []>} : vector<8x32xf32>, vector<32x384xf32>, vector<8x384xf32> -> vector<8x384xf32>
    %c0_3 = arith.constant 0 : index
    %c0_4 = arith.constant 0 : index
    %3 = vector.load %arg3[%c0_3, %c0_4] : memref<1x384xf32, #tpu.memory_space<vmem>>, vector<1x384xf32>
    %4 = vector.broadcast %3 : vector<1x384xf32> to vector<8x384xf32>
    %5 = arith.addf %2, %4 : vector<8x384xf32>
    %c0_5 = arith.constant 0 : index
    %c0_6 = arith.constant 0 : index
    %6 = vector.load %arg4[%c0_5, %c0_6] : memref<8x384xf32, #tpu.memory_space<vmem>>, vector<8x384xf32>
    tpu.vector_store %arg4[%c0_5, %c0_6], %5 {strides = array<i32>} : memref<8x384xf32, #tpu.memory_space<vmem>>, vector<8x384xf32>,
    return
  }
  func.func @transform_0(%arg0: i32) -> (i32, i32) {
    %c0_i32 = arith.constant 0 : i32
    %c0_i32_0 = arith.constant 0 : i32
    return %arg0, %c0_i32 : i32, i32
  }
  func.func @transform_1(%arg0: i32) -> (i32, i32) {
    %c0_i32 = arith.constant 0 : i32
    %c0_i32_0 = arith.constant 0 : i32
    %c0_i32_1 = arith.constant 0 : i32
    return %c0_i32, %c0_i32_0 : i32, i32
  }
  func.func @transform_2(%arg0: i32) -> (i32, i32) {
    %c0_i32 = arith.constant 0 : i32
    %c0_i32_0 = arith.constant 0 : i32
    %c0_i32_1 = arith.constant 0 : i32
    return %c0_i32, %c0_i32_0 : i32, i32
  }
  func.func @transform_3(%arg0: i32) -> (i32, i32) {
    %c0_i32 = arith.constant 0 : i32
    %c0_i32_0 = arith.constant 0 : i32
    return %arg0, %c0_i32 : i32, i32
  }
}

</mosaic_0001>

<llo_original>
// kernel: tpu_custom_call.1
$region0: #{tpu_custom_call.1}
  #allocation0 [shape = 'u32[]', space=smem, size = 0x4, offset = 0x4, fixed_abs, tag = 'smem constant byte address 0x4 - core index']
  #allocation1 [shape = 'u32[144,128]{1,0:T(1,128)}', space=vmem, size = 0x12000, scoped, tag = 'internal scratch']
  %s0 = inlined_call_operand.hbm [shape: f32[8,32], index: 0, kind: input, shape index: {}]
  %s1 = inlined_call_operand.hbm [shape: f32[32,384], index: 1, kind: input, shape index: {}]
  %s2 = inlined_call_operand.vmem [shape: f32[1,384], index: 2, kind: input, shape index: {}]
  %s3 = inlined_call_operand.hbm [shape: f32[8,384], index: 3, kind: output, shape index: {}]
  %s4 = sld [smem:[#allocation0]]
  $region30: #{tpu_custom_call.1} parent=0
    _
  %s6 = ssub.s32 1, %s4
  %s7 = scalar_select 0, %s6, %s4
  $region1: #{tpu_custom_call.1} parent=0
    #allocation2 [shape = 'u8[4096]{0}', space=vmem, size = 0x1000, scoped, tag = 'input window, operand 0, single buffered']
    #allocation3 [shape = 's32[1]{0}', space=sflag, size = 0x4, scoped, tag = 'scoped memory for tpu_custom_call.1']
    #allocation4 [shape = 's32[1]{0}', space=sflag, size = 0x4, scoped, tag = 'scoped memory for tpu_custom_call.1']
    #allocation5 [shape = 'u8[49152]{0}', space=vmem, size = 0xc000, scoped, tag = 'input window, operand 1, single buffered']
    #allocation6 [shape = 's32[1]{0}', space=sflag, size = 0x4, scoped, tag = 'scoped memory for tpu_custom_call.1']
    #allocation7 [shape = 'u8[12288]{0}', space=vmem, size = 0x3000, scoped, tag = 'output window, operand 0, single buffered']
    %8 = vsyncpa [#allocation3], 0
    %9 = vsyncpa [#allocation6], 0
    %10 = vsyncpa [#allocation4], 0
    // Predicated region
    $region2: #{tpu_custom_call.1} parent=1 // pred_check
      _
    $region3: #{tpu_custom_call.1} parent=1 // pred_check_branch
      %12 = sbr.rel (0) target = $region5
    $region4: #{tpu_custom_call.1} parent=1 // pred_region
      %s14 = ssub.s32 128, 128
      %15 = vsyncadd [#allocation3], %s14
      %s17 = sshll.u32 [#allocation2], 4
      %s18 = int_to_ptr.vmem [resolvable:$true] %s17
      %20 = dma.hbm_to_vmem [thread:$0]  %s0, 128, %s18, [#allocation3]
    $region5: #{tpu_custom_call.1} parent=1 // pred_fallthru
      _
    // Predicated region
    $region6: #{tpu_custom_call.1} parent=1 // pred_check
      _
    $region7: #{tpu_custom_call.1} parent=1 // pred_check_branch
      %22 = sbr.rel (0) target = $region9
    $region8: #{tpu_custom_call.1} parent=1 // pred_region
      %s24 = ssub.s32 1536, 1536
      %25 = vsyncadd [#allocation6], %s24
      %s26 = sshll.u32 [#allocation5], 4
      %s27 = int_to_ptr.vmem [resolvable:$true] %s26
      %32 = dma.hbm_to_vmem [thread:$0]  %s1, 1536, %s27, [#allocation6], 384, 384, 24
    $region9: #{tpu_custom_call.1} parent=1 // pred_fallthru
      _
    // Predicated region
    $region10: #{tpu_custom_call.1} parent=1 // pred_check
      _
    $region11: #{tpu_custom_call.1} parent=1 // pred_check_branch
      %34 = sbr.rel (0) target = $region13
    $region12: #{tpu_custom_call.1} parent=1 // pred_region
      _
    $region13: #{tpu_custom_call.1} parent=1 // pred_fallthru
      _
    // Predicated region
    $region14: #{tpu_custom_call.1} parent=1 // pred_check
      _
    $region15: #{tpu_custom_call.1} parent=1 // pred_check_branch
      %36 = sbr.rel (0) target = $region17
    $region16: #{tpu_custom_call.1} parent=1 // pred_region
      %37 = dma.done [#allocation3], 128
    $region17: #{tpu_custom_call.1} parent=1 // pred_fallthru
      _
    // Predicated region
    $region18: #{tpu_custom_call.1} parent=1 // pred_check
      _
    $region19: #{tpu_custom_call.1} parent=1 // pred_check_branch
      %39 = sbr.rel (0) target = $region21
    $region20: #{tpu_custom_call.1} parent=1 // pred_region
      %40 = dma.done [#allocation6], 1536
    $region21: #{tpu_custom_call.1} parent=1 // pred_fallthru
      _
    %v41 = vld [vmem:[#allocation2] sm:$0xff]
    %v42 = vld [vmem:[#allocation5] sm:$0xff]
    %v43 = vld [vmem:[#allocation5 + $0x8] sm:$0xff]
    %v44 = vld [vmem:[#allocation5 + $0x10] sm:$0xff]
    %v45 = vld [vmem:[#allocation5 + $0x18] sm:$0xff]
    %v46 = vld [vmem:[#allocation5 + $0x20] sm:$0xff]
    %v47 = vld [vmem:[#allocation5 + $0x28] sm:$0xff]
    %v48 = vld [vmem:[#allocation5 + $0x30] sm:$0xff]
    %v49 = vld [vmem:[#allocation5 + $0x38] sm:$0xff]
    %v50 = vld [vmem:[#allocation5 + $0x40] sm:$0xff]
    %v51 = vld [vmem:[#allocation5 + $0x48] sm:$0xff]
    %v52 = vld [vmem:[#allocation5 + $0x50] sm:$0xff]
    %v53 = vld [vmem:[#allocation5 + $0x58] sm:$0xff]
    %v54 = vld [vmem:[%s2] sm:$0x7]
    %v56 = vlaneseq
    %v57 = vshrl.u32 %v56, 7
    %v58 = vsub.s32 0, %v57
    %v59 = vrot.slane %v54, %v58
    %v60 = vlaneseq
    %v61 = vshrl.u32 %v60, 7
    %v62 = vsub.s32 1, %v61
    %v63 = vrot.slane %v54, %v62
    %v64 = vlaneseq
    %v65 = vshrl.u32 %v64, 7
    %v66 = vsub.s32 2, %v65
    %v67 = vrot.slane %v54, %v66
    %vm71 = vcmask 261120
    %v73 = vsel %vm71, %v41, 0
    %75 = vmatprep.subr.mxu0 %v43
    %76 = vmatpush1.msra.mxu0 %v42
    %77 = vmatprep.subr.mxu0 %v46
    %78 = vmatpush1.msra.mxu0 %v45
    %79 = vmatprep.subr.mxu0 %v49
    %80 = vmatpush1.msra.mxu0 %v48
    %81 = vmatprep.subr.mxu0 %v52
    %82 = vmatpush1.msra.mxu0 %v51
    %83 = vmatprep.subr.mxu0 0.0
    %84 = vmatpush1.msra.mxu0 0.0
    %85 = vmatprep.subr.mxu0 0.0
    %86 = vmatpush1.msra.mxu0 0.0
    %87 = vmatprep.subr.mxu0 0.0
    %88 = vmatpush1.msra.mxu0 0.0
    %89 = vmatprep.subr.mxu0 0.0
    %90 = vmatpush1.msra.mxu0 0.0
    %91 = vmatprep.subr.mxu0 0.0
    %92 = vmatpush1.msra.mxu0 0.0
    %93 = vmatprep.subr.mxu0 0.0
    %94 = vmatpush1.msra.mxu0 0.0
    %95 = vmatprep.subr.mxu0 0.0
    %96 = vmatpush1.msra.mxu0 0.0
    %97 = vmatprep.subr.mxu0 0.0
    %98 = vmatpush1.msra.mxu0 0.0
    %99 = vmatprep.subr.mxu0 0.0
    %100 = vmatpush1.msra.mxu0 0.0
    %101 = vmatprep.subr.mxu0 0.0
    %102 = vmatpush1.msra.mxu0 0.0
    %103 = vmatprep.subr.mxu0 0.0
    %104 = vmatpush1.msra.mxu0 0.0
    %105 = vmatprep.subr.mxu0 0.0
    %106 = vmatpush1.msra.mxu0 0.0
    %107 = vmatprep.subr.mxu0 0.0
    %108 = vmatpush1.msra.mxu0 0.0
    %109 = vmatprep.subr.mxu0 0.0
    %110 = vmatpush1.msra.mxu0 0.0
    %111 = vmatprep.subr.mxu0 0.0
    %112 = vmatpush1.msra.mxu0 0.0
    %113 = vmatprep.subr.mxu0 0.0
    %114 = vmatpush1.msra.mxu0 0.0
    %115 = vmatprep.subr.mxu0 0.0
    %116 = vmatpush1.msra.mxu0 0.0
    %117 = vmatprep.subr.mxu0 0.0
    %118 = vmatpush1.msra.mxu0 0.0
    %119 = vmatprep.subr.mxu0 0.0
    %120 = vmatpush1.msra.mxu0 0.0
    %121 = vmatprep.subr.mxu0 0.0
    %122 = vmatpush1.msra.mxu0 0.0
    %123 = vmatprep.subr.mxu0 0.0
    %124 = vmatpush1.msra.mxu0 0.0
    %125 = vmatprep.subr.mxu0 0.0
    %126 = vmatpush1.msra.mxu0 0.0
    %127 = vmatprep.subr.mxu0 0.0
    %128 = vmatpush1.msra.mxu0 0.0
    %129 = vmatprep.subr.mxu0 0.0
    %130 = vmatpush1.msra.mxu0 0.0
    %131 = vmatprep.subr.mxu0 0.0
    %132 = vmatpush1.msra.mxu0 0.0
    %133 = vmatprep.subr.mxu0 0.0
    %134 = vmatpush1.msra.mxu0 0.0
    %135 = vmatprep.subr.mxu0 0.0
    %136 = vmatpush1.msra.mxu0 0.0
    %137 = vmatprep.subr.mxu0 0.0
    %138 = vmatpush1.msra.mxu0 0.0
    %139 = vmatprep.mubr.f32.mxu0 0.0
    %140 = vmatmul.mubr.f32.gmra.mrb[0].mxu0 %v73
    %v141 = vpop.f32.mrb[0].mxu0
    %v142 = vadd.f32 %v59, %v141
    %v143 = vpop.f32.mrb[0].mxu0
    %v144 = vadd.f32 %v63, %v143
    %145 = vdwg.mxu0
    %146 = vmatprep.subr.mxu0 0.0
    %147 = vmatpush1.msra.mxu0 %v44
    %148 = vmatprep.subr.mxu0 0.0
    %149 = vmatpush1.msra.mxu0 %v47
    %150 = vmatprep.subr.mxu0 0.0
    %151 = vmatpush1.msra.mxu0 %v50
    %152 = vmatprep.subr.mxu0 0.0
    %153 = vmatpush1.msra.mxu0 %v53
    %154 = vmatprep.subr.mxu0 0.0
    %155 = vmatpush1.msra.mxu0 0.0
    %156 = vmatprep.subr.mxu0 0.0
    %157 = vmatpush1.msra.mxu0 0.0
    %158 = vmatprep.subr.mxu0 0.0
    %159 = vmatpush1.msra.mxu0 0.0
    %160 = vmatprep.subr.mxu0 0.0
    %161 = vmatpush1.msra.mxu0 0.0
    %162 = vmatprep.subr.mxu0 0.0
    %163 = vmatpush1.msra.mxu0 0.0
    %164 = vmatprep.subr.mxu0 0.0
    %165 = vmatpush1.msra.mxu0 0.0
    %166 = vmatprep.subr.mxu0 0.0
    %167 = vmatpush1.msra.mxu0 0.0
    %168 = vmatprep.subr.mxu0 0.0
    %169 = vmatpush1.msra.mxu0 0.0
    %170 = vmatprep.subr.mxu0 0.0
    %171 = vmatpush1.msra.mxu0 0.0
    %172 = vmatprep.subr.mxu0 0.0
    %173 = vmatpush1.msra.mxu0 0.0
    %174 = vmatprep.subr.mxu0 0.0
    %175 = vmatpush1.msra.mxu0 0.0
    %176 = vmatprep.subr.mxu0 0.0
    %177 = vmatpush1.msra.mxu0 0.0
    %178 = vmatprep.subr.mxu0 0.0
    %179 = vmatpush1.msra.mxu0 0.0
    %180 = vmatprep.subr.mxu0 0.0
    %181 = vmatpush1.msra.mxu0 0.0
    %182 = vmatprep.subr.mxu0 0.0
    %183 = vmatpush1.msra.mxu0 0.0
    %184 = vmatprep.subr.mxu0 0.0
    %185 = vmatpush1.msra.mxu0 0.0
    %186 = vmatprep.subr.mxu0 0.0
    %187 = vmatpush1.msra.mxu0 0.0
    %188 = vmatprep.subr.mxu0 0.0
    %189 = vmatpush1.msra.mxu0 0.0
    %190 = vmatprep.subr.mxu0 0.0
    %191 = vmatpush1.msra.mxu0 0.0
    %192 = vmatprep.subr.mxu0 0.0
    %193 = vmatpush1.msra.mxu0 0.0
    %194 = vmatprep.subr.mxu0 0.0
    %195 = vmatpush1.msra.mxu0 0.0
    %196 = vmatprep.subr.mxu0 0.0
    %197 = vmatpush1.msra.mxu0 0.0
    %198 = vmatprep.subr.mxu0 0.0
    %199 = vmatpush1.msra.mxu0 0.0
    %200 = vmatprep.subr.mxu0 0.0
    %201 = vmatpush1.msra.mxu0 0.0
    %202 = vmatprep.subr.mxu0 0.0
    %203 = vmatpush1.msra.mxu0 0.0
    %204 = vmatprep.subr.mxu0 0.0
    %205 = vmatpush1.msra.mxu0 0.0
    %206 = vmatprep.subr.mxu0 0.0
    %207 = vmatpush1.msra.mxu0 0.0
    %208 = vmatprep.subr.mxu0 0.0
    %209 = vmatpush1.msra.mxu0 0.0
    %210 = vmatprep.mubr.f32.mxu0 0.0
    %211 = vmatmul.mubr.f32.gmra.mrb[0].mxu0 %v73
    %v212 = vpop.f32.mrb[0].mxu0
    %v213 = vadd.f32 %v67, %v212
    %v214 = vpop.f32.mrb[0].mxu0
    %215 = vdwg.mxu0
    %216 = vst [vmem:[#allocation7] sm:$0xff] %v142
    %217 = vst [vmem:[#allocation7 + $0x8] sm:$0xff] %v144
    %218 = vst [vmem:[#allocation7 + $0x10] sm:$0xff] %v213
    // Predicated region
    $region22: #{tpu_custom_call.1} parent=1 // pred_check
      _
    $region23: #{tpu_custom_call.1} parent=1 // pred_check_branch
      %220 = sbr.rel (0) target = $region25
    $region24: #{tpu_custom_call.1} parent=1 // pred_region
      %s222 = ssub.s32 384, 384
      %223 = vsyncadd [#allocation4], %s222
      %s225 = sshll.u32 [#allocation7], 4
      %s226 = int_to_ptr.vmem [resolvable:$true] %s225
      %228 = dma.vmem_to_hbm [thread:$0]  %s226, 384, %s3, [#allocation4]
    $region25: #{tpu_custom_call.1} parent=1 // pred_fallthru
      _
    // Predicated region
    $region26: #{tpu_custom_call.1} parent=1 // pred_check
      _
    $region27: #{tpu_custom_call.1} parent=1 // pred_check_branch
      %230 = sbr.rel (0) target = $region29
    $region28: #{tpu_custom_call.1} parent=1 // pred_region
      %231 = dma.done [#allocation4], 384
    $region29: #{tpu_custom_call.1} parent=1 // pred_fallthru
      _
    %232 = vsyncpa [#allocation3], 1
    %233 = vsyncpa [#allocation6], 1
    %234 = vsyncpa [#allocation4], 1

</llo_original>
